<compile_context>
chip_gen: v7x
topology: tpu7x:2x2x1
jax: 0.10.0
libtpu: 0.0.40
codegen_flags: <defaults>
</compile_context>

<pallas_src>
import functools
import math

import jax
import jax.numpy as jnp
from jax.experimental import pallas as pl
from jax.experimental.pallas import tpu as pltpu


def logits_kernel(x_ref, w1_ref, w2_ref, o_ref):
    # support = tanh(w1 @ x_t_tile): (n_hidden, tile_b), f32 accumulation, f32 tanh.
    support = jnp.tanh(
        jnp.dot(w1_ref[...], x_ref[...], preferred_element_type=jnp.float32)
    )
    # logits = w2 @ support: cast support back to the matmul dtype (bf16 MXU
    # path), accumulate in f32.  Full-tile store -> unmasked lane-aligned vst.
    o_ref[...] = jnp.dot(
        w2_ref[...], support.astype(w2_ref.dtype),
        preferred_element_type=jnp.float32,
    )


def softmax_kernel(l_ref, o_ref, *, batch):
    logits = l_ref[...]                       # (n_expert, batch_p), f32
    lane = jax.lax.broadcasted_iota(jnp.int32, logits.shape, 1)
    valid = lane < batch                      # mask padded batch columns
    masked = jnp.where(valid, logits, -jnp.inf)
    m = jnp.max(masked, axis=1, keepdims=True)
    e = jnp.exp(masked - m)                   # exp(-inf) == 0 at padded columns
    denom = jnp.sum(e, axis=1, keepdims=True)
    # EUP approx reciprocal + one Newton step (near-exact, VALU-cheap).
    r = pl.reciprocal(denom, approx=True)
    r = r * (2.0 - denom * r)
    o_ref[...] = e * r


def attention_forward(x, w1, w2, *, tile_b=512, compute_dtype=jnp.bfloat16):
    batch, v_hidden = x.shape
    n_hidden = w1.shape[0]
    n_expert = w2.shape[0]

    # Lane-dense layout: transpose x once in the wrapper so the streamed block's
    # minor (lane) dim is the 128-multiple batch tile.  Matmul operands in
    # compute_dtype (bf16 by default); accumulation stays f32.
    x_t = x.T.astype(compute_dtype)           # (v_hidden, batch)
    w1c = w1.astype(compute_dtype)
    w2c = w2.astype(compute_dtype)

    # Pad batch only up to the next lane multiple (<= 127 extra columns), then
    # pick the largest tile (multiple of 128, <= tile_b) dividing it exactly, so
    # every output store stays a full, unmasked lane-aligned block.
    batch_p = pl.cdiv(batch, 128) * 128
    tile = min(max(tile_b // 128, 1) * 128, batch_p)
    while batch_p % tile != 0:
        tile -= 128
    num_tiles = batch_p // tile
    if batch_p != batch:
        x_t = jnp.pad(x_t, ((0, 0), (0, batch_p - batch)))

    itemsize = jnp.dtype(compute_dtype).itemsize
    logits_cost = pl.CostEstimate(
        flops=2 * batch_p * v_hidden * n_hidden
              + 2 * batch_p * n_hidden * n_expert,
        transcendentals=batch_p * n_hidden,                       # tanh
        bytes_accessed=(v_hidden * batch_p + n_hidden * v_hidden
                        + n_expert * n_hidden) * itemsize
                       + n_expert * batch_p * 4,
    )

    # Phase 1: per-tile logits.  Independent tiles -> "parallel" grid axis.
    logits = pl.pallas_call(
        logits_kernel,
        out_shape=jax.ShapeDtypeStruct((n_expert, batch_p), jnp.float32),
        grid=(num_tiles,),
        in_specs=[
            pl.BlockSpec((v_hidden, tile), lambda b: (0, b)),      # streamed x
            pl.BlockSpec((n_hidden, v_hidden), lambda b: (0, 0)),  # resident w1
            pl.BlockSpec((n_expert, n_hidden), lambda b: (0, 0)),  # resident w2
        ],
        out_specs=pl.BlockSpec((n_expert, tile), lambda b: (0, b)),
        compiler_params=pltpu.CompilerParams(
            dimension_semantics=("parallel",),
        ),
        cost_estimate=logits_cost,
    )(x_t, w1c, w2c)

    # Phase 2: softmax over the full batch axis (tiny: n_expert rows).
    # TODO(synk): for very large batch, tile this reduction (two-pass max/sum)
    # instead of holding the whole (n_expert, batch_p) slab in VMEM at once.
    softmax_cost = pl.CostEstimate(
        flops=6 * n_expert * batch_p,
        transcendentals=n_expert * batch_p,                        # exp
        bytes_accessed=2 * n_expert * batch_p * 4,
    )
    out = pl.pallas_call(
        functools.partial(softmax_kernel, batch=batch),
        out_shape=jax.ShapeDtypeStruct((n_expert, batch_p), jnp.float32),
        cost_estimate=softmax_cost,
    )(logits)

    return out[:, :batch]


def reference_forward(x, w1, w2):
    x_t = x.T
    support = jnp.tanh(w1 @ x_t)
    logits = w2 @ support
    return jax.nn.softmax(logits, axis=1)


if __name__ == "__main__":
    # Small shapes consistent with the module.
    n_expert, n_hidden, v_hidden = 4, 32, 32
    batch = 8

    key = jax.random.PRNGKey(0)
    kx, k1, k2 = jax.random.split(key, 3)

    # Deterministic parameter init, mirroring reset_parameters():
    #   w1 ~ U(-1/sqrt(v_hidden), 1/sqrt(v_hidden))
    #   w2 ~ U(-1/sqrt(n_hidden), 1/sqrt(n_hidden))
    stdv1 = 1.0 / math.sqrt(v_hidden)
    stdv2 = 1.0 / math.sqrt(n_hidden)
    w1 = jax.random.uniform(k1, (n_hidden, v_hidden), jnp.float32,
                            minval=-stdv1, maxval=stdv1)
    w2 = jax.random.uniform(k2, (n_expert, n_hidden), jnp.float32,
                            minval=-stdv2, maxval=stdv2)
    x = jax.random.normal(kx, (batch, v_hidden), jnp.float32)

    ref = reference_forward(x, w1, w2)

    # f32 compute path: tight tolerance vs reference.
    out_f32 = jax.block_until_ready(
        attention_forward(x, w1, w2, compute_dtype=jnp.float32))
    assert out_f32.shape == (n_expert, batch)
    assert jnp.allclose(out_f32, ref, atol=1e-5, rtol=1e-5), "f32 mismatch"
    assert jnp.allclose(jnp.sum(out_f32, axis=1), 1.0, atol=1e-5)

    # bf16 MXU path (default, perf config): looser tolerance; row sums still ~1
    # because softmax math stays f32.
    out_bf16 = jax.block_until_ready(attention_forward(x, w1, w2))
    assert out_bf16.shape == (n_expert, batch)
    assert jnp.allclose(out_bf16, ref, atol=2e-2, rtol=2e-2), "bf16 mismatch"
    assert jnp.allclose(jnp.sum(out_bf16, axis=1), 1.0, atol=1e-4)

    print("KERNEL_OK")
</pallas_src>

<mosaic_0001>
module attributes {stable_mosaic.version = 11 : i64} {
  func.func @logits_kernel(%arg0: i32, %arg1: memref<32x128xf32, #tpu.memory_space<vmem>>, %arg2: memref<32x32xf32, #tpu.memory_space<vmem>>, %arg3: memref<4x32xf32, #tpu.memory_space<vmem>>, %arg4: memref<4x128xf32, #tpu.memory_space<vmem>>) attributes {dimension_semantics = [#tpu.dimension_semantics<parallel>], iteration_bounds = array<i64: 1>, scalar_prefetch = 0 : i64, scratch_operands = 0 : i64, tpu.core_type = #tpu.core_type<tc>, window_params = [{transform_indices = @transform_0, window_bounds = array<i64: 32, 128>}, {pipeline_mode = #tpu.pipeline_mode<synchronous>, transform_indices = @transform_1, window_bounds = array<i64: 32, 32>}, {pipeline_mode = #tpu.pipeline_mode<synchronous>, transform_indices = @transform_2, window_bounds = array<i64: 4, 32>}, {transform_indices = @transform_3, window_bounds = array<i64: 4, 128>}]} {
    %c0 = arith.constant 0 : index
    %c0_0 = arith.constant 0 : index
    %0 = vector.load %arg2[%c0, %c0_0] : memref<32x32xf32, #tpu.memory_space<vmem>>, vector<32x32xf32>
    %c0_1 = arith.constant 0 : index
    %c0_2 = arith.constant 0 : index
    %1 = vector.load %arg1[%c0_1, %c0_2] : memref<32x128xf32, #tpu.memory_space<vmem>>, vector<32x128xf32>
    %cst = arith.constant dense<0.000000e+00> : vector<32x128xf32>
    %2 = tpu.matmul %0, %1, %cst {dimension_numbers = #tpu.dot_dimension_numbers<[1], [0], [0], [1], [0, 0, 1, 1], [], []>} : vector<32x32xf32>, vector<32x128xf32>, vector<32x128xf32> -> vector<32x128xf32>
    %3 = math.tanh %2 : vector<32x128xf32>
    %c0_3 = arith.constant 0 : index
    %c0_4 = arith.constant 0 : index
    %4 = vector.load %arg3[%c0_3, %c0_4] : memref<4x32xf32, #tpu.memory_space<vmem>>, vector<4x32xf32>
    %cst_5 = arith.constant dense<0.000000e+00> : vector<4x128xf32>
    %5 = tpu.matmul %4, %3, %cst_5 {dimension_numbers = #tpu.dot_dimension_numbers<[1], [0], [0], [1], [0, 0, 1, 1], [], []>} : vector<4x32xf32>, vector<32x128xf32>, vector<4x128xf32> -> vector<4x128xf32>
    %c0_6 = arith.constant 0 : index
    %c0_7 = arith.constant 0 : index
    %6 = vector.load %arg4[%c0_6, %c0_7] : memref<4x128xf32, #tpu.memory_space<vmem>>, vector<4x128xf32>
    tpu.vector_store %arg4[%c0_6, %c0_7], %5 {strides = array<i32>} : memref<4x128xf32, #tpu.memory_space<vmem>>, vector<4x128xf32>,
    return
  }
  func.func @transform_0(%arg0: i32) -> (i32, i32) {
    %c0_i32 = arith.constant 0 : i32
    %c0_i32_0 = arith.constant 0 : i32
    return %c0_i32, %arg0 : i32, i32
  }
  func.func @transform_1(%arg0: i32) -> (i32, i32) {
    %c0_i32 = arith.constant 0 : i32
    %c0_i32_0 = arith.constant 0 : i32
    %c0_i32_1 = arith.constant 0 : i32
    return %c0_i32, %c0_i32_0 : i32, i32
  }
  func.func @transform_2(%arg0: i32) -> (i32, i32) {
    %c0_i32 = arith.constant 0 : i32
    %c0_i32_0 = arith.constant 0 : i32
    %c0_i32_1 = arith.constant 0 : i32
    return %c0_i32, %c0_i32_0 : i32, i32
  }
  func.func @transform_3(%arg0: i32) -> (i32, i32) {
    %c0_i32 = arith.constant 0 : i32
    %c0_i32_0 = arith.constant 0 : i32
    return %c0_i32, %arg0 : i32, i32
  }
}

</mosaic_0001>

<llo_original>
// kernel: tpu_custom_call.1
$region0: #{tpu_custom_call.1}
  #allocation0 [shape = 'u32[]', space=smem, size = 0x4, offset = 0x4, fixed_abs, tag = 'smem constant byte address 0x4 - core index']
  #allocation1 [shape = 'u32[144,128]{1,0:T(1,128)}', space=vmem, size = 0x12000, scoped, tag = 'internal scratch']
  %s0 = inlined_call_operand.hbm [shape: f32[32,128], index: 0, kind: input, shape index: {}]
  %s1 = inlined_call_operand.hbm [shape: f32[32,32], index: 1, kind: input, shape index: {}]
  %s2 = inlined_call_operand.vmem [shape: f32[4,32], index: 2, kind: input, shape index: {}]
  %s3 = inlined_call_operand.hbm [shape: f32[4,128], index: 3, kind: output, shape index: {}]
  %s4 = sld [smem:[#allocation0]]
  $region30: #{tpu_custom_call.1} parent=0
    _
  %s6 = ssub.s32 1, %s4
  %s7 = scalar_select 0, %s6, %s4
  $region1: #{tpu_custom_call.1} parent=0
    #allocation2 [shape = 'u8[16384]{0}', space=vmem, size = 0x4000, scoped, tag = 'input window, operand 0, single buffered']
    #allocation3 [shape = 's32[1]{0}', space=sflag, size = 0x4, scoped, tag = 'scoped memory for tpu_custom_call.1']
    #allocation4 [shape = 's32[1]{0}', space=sflag, size = 0x4, scoped, tag = 'scoped memory for tpu_custom_call.1']
    #allocation5 [shape = 'u8[16384]{0}', space=vmem, size = 0x4000, scoped, tag = 'input window, operand 1, single buffered']
    #allocation6 [shape = 's32[1]{0}', space=sflag, size = 0x4, scoped, tag = 'scoped memory for tpu_custom_call.1']
    #allocation7 [shape = 'u8[2048]{0}', space=vmem, size = 0x800, scoped, tag = 'output window, operand 0, single buffered']
    %8 = vsyncpa [#allocation3], 0
    %9 = vsyncpa [#allocation6], 0
    %10 = vsyncpa [#allocation4], 0
    // Predicated region
    $region2: #{tpu_custom_call.1} parent=1 // pred_check
      _
    $region3: #{tpu_custom_call.1} parent=1 // pred_check_branch
      %12 = sbr.rel (0) target = $region5
    $region4: #{tpu_custom_call.1} parent=1 // pred_region
      %s14 = ssub.s32 512, 512
      %15 = vsyncadd [#allocation3], %s14
      %s16 = sshll.u32 [#allocation2], 4
      %s17 = int_to_ptr.vmem [resolvable:$true] %s16
      %22 = dma.hbm_to_vmem [thread:$0]  %s0, 512, %s17, [#allocation3], 128, 128, 8
    $region5: #{tpu_custom_call.1} parent=1 // pred_fallthru
      _
    // Predicated region
    $region6: #{tpu_custom_call.1} parent=1 // pred_check
      _
    $region7: #{tpu_custom_call.1} parent=1 // pred_check_branch
      %24 = sbr.rel (0) target = $region9
    $region8: #{tpu_custom_call.1} parent=1 // pred_region
      %s26 = ssub.s32 512, 512
      %27 = vsyncadd [#allocation6], %s26
      %s28 = sshll.u32 [#allocation5], 4
      %s29 = int_to_ptr.vmem [resolvable:$true] %s28
      %34 = dma.hbm_to_vmem [thread:$0]  %s1, 512, %s29, [#allocation6], 128, 128, 8
    $region9: #{tpu_custom_call.1} parent=1 // pred_fallthru
      _
    // Predicated region
    $region10: #{tpu_custom_call.1} parent=1 // pred_check
      _
    $region11: #{tpu_custom_call.1} parent=1 // pred_check_branch
      %36 = sbr.rel (0) target = $region13
    $region12: #{tpu_custom_call.1} parent=1 // pred_region
      _
    $region13: #{tpu_custom_call.1} parent=1 // pred_fallthru
      _
    // Predicated region
    $region14: #{tpu_custom_call.1} parent=1 // pred_check
      _
    $region15: #{tpu_custom_call.1} parent=1 // pred_check_branch
      %38 = sbr.rel (0) target = $region17
    $region16: #{tpu_custom_call.1} parent=1 // pred_region
      %39 = dma.done [#allocation3], 512
    $region17: #{tpu_custom_call.1} parent=1 // pred_fallthru
      _
    // Predicated region
    $region18: #{tpu_custom_call.1} parent=1 // pred_check
      _
    $region19: #{tpu_custom_call.1} parent=1 // pred_check_branch
      %41 = sbr.rel (0) target = $region21
    $region20: #{tpu_custom_call.1} parent=1 // pred_region
      %42 = dma.done [#allocation6], 512
    $region21: #{tpu_custom_call.1} parent=1 // pred_fallthru
      _
    %v43 = vld [vmem:[#allocation5] sm:$0xff]
    %v44 = vld [vmem:[#allocation5 + $0x8] sm:$0xff]
    %v45 = vld [vmem:[#allocation5 + $0x10] sm:$0xff]
    %v46 = vld [vmem:[#allocation5 + $0x18] sm:$0xff]
    %v47 = vld [vmem:[#allocation2] sm:$0xff]
    %v48 = vld [vmem:[#allocation2 + $0x8] sm:$0xff]
    %v49 = vld [vmem:[#allocation2 + $0x10] sm:$0xff]
    %v50 = vld [vmem:[#allocation2 + $0x18] sm:$0xff]
    %vm51 = vcmask 261120
    %v53 = vsel %vm51, %v43, 0
    %v56 = vsel %vm51, %v44, 0
    %v59 = vsel %vm51, %v45, 0
    %v62 = vsel %vm51, %v46, 0
    %64 = vmatprep.subr.mxu0 0.0
    %65 = vmatpush1.msra.mxu0 %v47
    %66 = vmatprep.subr.mxu0 0.0
    %67 = vmatpush1.msra.mxu0 %v48
    %68 = vmatprep.subr.mxu0 0.0
    %69 = vmatpush1.msra.mxu0 %v49
    %70 = vmatprep.subr.mxu0 0.0
    %71 = vmatpush1.msra.mxu0 %v50
    %72 = vmatprep.subr.mxu0 0.0
    %73 = vmatpush1.msra.mxu0 0.0
    %74 = vmatprep.subr.mxu0 0.0
    %75 = vmatpush1.msra.mxu0 0.0
    %76 = vmatprep.subr.mxu0 0.0
    %77 = vmatpush1.msra.mxu0 0.0
    %78 = vmatprep.subr.mxu0 0.0
    %79 = vmatpush1.msra.mxu0 0.0
    %80 = vmatprep.subr.mxu0 0.0
    %81 = vmatpush1.msra.mxu0 0.0
    %82 = vmatprep.subr.mxu0 0.0
    %83 = vmatpush1.msra.mxu0 0.0
    %84 = vmatprep.subr.mxu0 0.0
    %85 = vmatpush1.msra.mxu0 0.0
    %86 = vmatprep.subr.mxu0 0.0
    %87 = vmatpush1.msra.mxu0 0.0
    %88 = vmatprep.subr.mxu0 0.0
    %89 = vmatpush1.msra.mxu0 0.0
    %90 = vmatprep.subr.mxu0 0.0
    %91 = vmatpush1.msra.mxu0 0.0
    %92 = vmatprep.subr.mxu0 0.0
    %93 = vmatpush1.msra.mxu0 0.0
    %94 = vmatprep.subr.mxu0 0.0
    %95 = vmatpush1.msra.mxu0 0.0
    %96 = vmatprep.subr.mxu0 0.0
    %97 = vmatpush1.msra.mxu0 0.0
    %98 = vmatprep.subr.mxu0 0.0
    %99 = vmatpush1.msra.mxu0 0.0
    %100 = vmatprep.subr.mxu0 0.0
    %101 = vmatpush1.msra.mxu0 0.0
    %102 = vmatprep.subr.mxu0 0.0
    %103 = vmatpush1.msra.mxu0 0.0
    %104 = vmatprep.subr.mxu0 0.0
    %105 = vmatpush1.msra.mxu0 0.0
    %106 = vmatprep.subr.mxu0 0.0
    %107 = vmatpush1.msra.mxu0 0.0
    %108 = vmatprep.subr.mxu0 0.0
    %109 = vmatpush1.msra.mxu0 0.0
    %110 = vmatprep.subr.mxu0 0.0
    %111 = vmatpush1.msra.mxu0 0.0
    %112 = vmatprep.subr.mxu0 0.0
    %113 = vmatpush1.msra.mxu0 0.0
    %114 = vmatprep.subr.mxu0 0.0
    %115 = vmatpush1.msra.mxu0 0.0
    %116 = vmatprep.subr.mxu0 0.0
    %117 = vmatpush1.msra.mxu0 0.0
    %118 = vmatprep.subr.mxu0 0.0
    %119 = vmatpush1.msra.mxu0 0.0
    %120 = vmatprep.subr.mxu0 0.0
    %121 = vmatpush1.msra.mxu0 0.0
    %122 = vmatprep.subr.mxu0 0.0
    %123 = vmatpush1.msra.mxu0 0.0
    %124 = vmatprep.subr.mxu0 0.0
    %125 = vmatpush1.msra.mxu0 0.0
    %126 = vmatprep.subr.mxu0 0.0
    %127 = vmatpush1.msra.mxu0 0.0
    %128 = vmatprep.mubr.f32.mxu0 0.0
    %129 = vmatmul.mubr.f32.gmra.mrb[0].mxu0 %v53
    %v130 = vpop.f32.mrb[0].mxu0
    %v131 = vadd.f32 0.0, %v130
    %v132 = vpop.f32.mrb[0].mxu0
    %133 = vmatprep.mubr.f32.mxu0 0.0
    %134 = vmatmul.mubr.f32.gmra.mrb[0].mxu0 %v56
    %v135 = vpop.f32.mrb[0].mxu0
    %v136 = vadd.f32 0.0, %v135
    %v137 = vpop.f32.mrb[0].mxu0
    %138 = vmatprep.mubr.f32.mxu0 0.0
    %139 = vmatmul.mubr.f32.gmra.mrb[0].mxu0 %v59
    %v140 = vpop.f32.mrb[0].mxu0
    %v141 = vadd.f32 0.0, %v140
    %v142 = vpop.f32.mrb[0].mxu0
    %143 = vmatprep.mubr.f32.mxu0 0.0
    %144 = vmatmul.mubr.f32.gmra.mrb[0].mxu0 %v62
    %v145 = vpop.f32.mrb[0].mxu0
    %v146 = vadd.f32 0.0, %v145
    %v147 = vpop.f32.mrb[0].mxu0
    %148 = vdwg.mxu0
    %v149 = vtanh.pop %v131
    %v150 = vtanh.pop %v136
    %v151 = vtanh.pop %v141
    %v152 = vtanh.pop %v146
    %v153 = vld [vmem:[%s2] sm:$0xf]
    %v155 = vsel %vm51, %v153, 0
    %157 = vmatprep.subr.mxu0 0.0
    %158 = vmatpush1.msra.mxu0 %v149
    %159 = vmatprep.subr.mxu0 0.0
    %160 = vmatpush1.msra.mxu0 %v150
    %161 = vmatprep.subr.mxu0 0.0
    %162 = vmatpush1.msra.mxu0 %v151
    %163 = vmatprep.subr.mxu0 0.0
    %164 = vmatpush1.msra.mxu0 %v152
    %165 = vmatprep.subr.mxu0 0.0
    %166 = vmatpush1.msra.mxu0 0.0
    %167 = vmatprep.subr.mxu0 0.0
    %168 = vmatpush1.msra.mxu0 0.0
    %169 = vmatprep.subr.mxu0 0.0
    %170 = vmatpush1.msra.mxu0 0.0
    %171 = vmatprep.subr.mxu0 0.0
    %172 = vmatpush1.msra.mxu0 0.0
    %173 = vmatprep.subr.mxu0 0.0
    %174 = vmatpush1.msra.mxu0 0.0
    %175 = vmatprep.subr.mxu0 0.0
    %176 = vmatpush1.msra.mxu0 0.0
    %177 = vmatprep.subr.mxu0 0.0
    %178 = vmatpush1.msra.mxu0 0.0
    %179 = vmatprep.subr.mxu0 0.0
    %180 = vmatpush1.msra.mxu0 0.0
    %181 = vmatprep.subr.mxu0 0.0
    %182 = vmatpush1.msra.mxu0 0.0
    %183 = vmatprep.subr.mxu0 0.0
    %184 = vmatpush1.msra.mxu0 0.0
    %185 = vmatprep.subr.mxu0 0.0
    %186 = vmatpush1.msra.mxu0 0.0
    %187 = vmatprep.subr.mxu0 0.0
    %188 = vmatpush1.msra.mxu0 0.0
    %189 = vmatprep.subr.mxu0 0.0
    %190 = vmatpush1.msra.mxu0 0.0
    %191 = vmatprep.subr.mxu0 0.0
    %192 = vmatpush1.msra.mxu0 0.0
    %193 = vmatprep.subr.mxu0 0.0
    %194 = vmatpush1.msra.mxu0 0.0
    %195 = vmatprep.subr.mxu0 0.0
    %196 = vmatpush1.msra.mxu0 0.0
    %197 = vmatprep.subr.mxu0 0.0
    %198 = vmatpush1.msra.mxu0 0.0
    %199 = vmatprep.subr.mxu0 0.0
    %200 = vmatpush1.msra.mxu0 0.0
    %201 = vmatprep.subr.mxu0 0.0
    %202 = vmatpush1.msra.mxu0 0.0
    %203 = vmatprep.subr.mxu0 0.0
    %204 = vmatpush1.msra.mxu0 0.0
    %205 = vmatprep.subr.mxu0 0.0
    %206 = vmatpush1.msra.mxu0 0.0
    %207 = vmatprep.subr.mxu0 0.0
    %208 = vmatpush1.msra.mxu0 0.0
    %209 = vmatprep.subr.mxu0 0.0
    %210 = vmatpush1.msra.mxu0 0.0
    %211 = vmatprep.subr.mxu0 0.0
    %212 = vmatpush1.msra.mxu0 0.0
    %213 = vmatprep.subr.mxu0 0.0
    %214 = vmatpush1.msra.mxu0 0.0
    %215 = vmatprep.subr.mxu0 0.0
    %216 = vmatpush1.msra.mxu0 0.0
    %217 = vmatprep.subr.mxu0 0.0
    %218 = vmatpush1.msra.mxu0 0.0
    %219 = vmatprep.subr.mxu0 0.0
    %220 = vmatpush1.msra.mxu0 0.0
    %221 = vmatprep.mubr.f32.mxu0 0.0
    %222 = vmatmul.mubr.f32.gmra.mrb[0].mxu0 %v155
    %v223 = vpop.f32.mrb[0].mxu0
    %v224 = vadd.f32 0.0, %v223
    %v225 = vpop.f32.mrb[0].mxu0
    %226 = vdwg.mxu0
    %227 = vst [vmem:[#allocation7] sm:$0xf] %v224
    // Predicated region
    $region22: #{tpu_custom_call.1} parent=1 // pred_check
      _
    $region23: #{tpu_custom_call.1} parent=1 // pred_check_branch
      %229 = sbr.rel (0) target = $region25
    $region24: #{tpu_custom_call.1} parent=1 // pred_region
      %s231 = ssub.s32 64, 64
      %232 = vsyncadd [#allocation4], %s231
      %s234 = sshll.u32 [#allocation7], 4
      %s235 = int_to_ptr.vmem [resolvable:$true] %s234
      %237 = dma.vmem_to_hbm [thread:$0]  %s235, 64, %s3, [#allocation4]
    $region25: #{tpu_custom_call.1} parent=1 // pred_fallthru
      _
    // Predicated region
    $region26: #{tpu_custom_call.1} parent=1 // pred_check
      _
    $region27: #{tpu_custom_call.1} parent=1 // pred_check_branch
      %239 = sbr.rel (0) target = $region29
    $region28: #{tpu_custom_call.1} parent=1 // pred_region
      %240 = dma.done [#allocation4], 64
    $region29: #{tpu_custom_call.1} parent=1 // pred_fallthru
      _
    %241 = vsyncpa [#allocation3], 1
    %242 = vsyncpa [#allocation6], 1
    %243 = vsyncpa [#allocation4], 1

</llo_original>
